<compile_context>
chip_gen: v7x
topology: tpu7x:2x2x1
jax: 0.10.0
libtpu: 0.0.40
codegen_flags: <defaults>
</compile_context>

<pallas_src>
import numpy as np
import jax
import jax.numpy as jnp
from jax.experimental import pallas as pl
from jax.experimental.pallas import tpu as pltpu


def _round_up(x, m):
    return (x + m - 1) // m * m


def _flat(a):
    return a.reshape(a.shape[0], -1)


def _loss_partials_kernel(pred_ref, targ_ref, wgt_ref, out_ref):
    """Per-block partial sums: [sum_rows(d^2), sum_rows(|d|), sum_rows(w)]."""
    p = pred_ref[...].astype(jnp.float32)
    t = targ_ref[...].astype(jnp.float32)
    w = wgt_ref[...].astype(jnp.float32)
    d = (p - t) * w                      # mse(a*w, b*w) == sum((w*(a-b))^2)/n
    part = jnp.concatenate(
        [jnp.sum(d * d, axis=0, keepdims=True),      # MSE numerators per column
         jnp.sum(jnp.abs(d), axis=0, keepdims=True),  # L1 numerators per column
         jnp.sum(w, axis=0, keepdims=True)],          # weight sums per column
        axis=0)                                       # (3, F_pad)
    out_ref[...] = part[None]                         # (1, 3, F_pad)


def l1_loss_dim_smpl_cam(output, labels, elements, size_average=True):
    """JAX wrapper reproducing L1LossDimSMPLCam.forward (returns scalar loss)."""
    pred_shape = _flat(output['pred_shape'])
    B = pred_shape.shape[0]

    pred_theta = _flat(output['pred_theta_mats'])
    pred_phi = _flat(output['pred_phi'])
    pred_uvd = output['pred_uvd_jts'].reshape(B, -1, 3)[:, :29].reshape(B, -1)
    cam_trans = _flat(output['cam_trans'])
    cam_scale = _flat(output['cam_scale'])

    n_uvd = pred_uvd.shape[1]
    target_beta = _flat(labels['target_beta'])
    target_theta = _flat(labels['target_theta'])
    target_twist = _flat(labels['target_twist'])
    target_uvd = _flat(labels['target_uvd_29'])[:, :n_uvd]
    camera_trans = _flat(labels['camera_trans'])
    camera_scale = _flat(labels['camera_scale'])

    f32 = jnp.float32
    sw = _flat(labels['target_smpl_weight']).astype(f32)             # (B, 1)
    theta_wt = _flat(labels['target_theta_weight']).astype(f32)
    twist_wt = _flat(labels['target_twist_weight']).astype(f32)
    uvd_wt = _flat(labels['target_weight_29'])[:, :n_uvd].astype(f32)
    pred_xyz = _flat(output['pred_xyz_jts_29'])[:, :72]              # defines xyz crop
    xyz_wt = _flat(labels['target_xyz_weight_24'])[:, :pred_xyz.shape[1]].astype(f32)

    n_beta = pred_shape.shape[1]
    n_theta = pred_theta.shape[1]
    n_twist = pred_phi.shape[1]
    n_trans = cam_trans.shape[1]
    n_scale = cam_scale.shape[1]

    # smpl_weight used for the cam terms: (sum of xyz weights > 3)
    sw2 = (jnp.sum(xyz_wt, axis=1, keepdims=True) > 3.0).astype(f32)

    # ---- Consolidate into 3 lane-dense slabs (feature axis concat) ----------
    pred_parts = [pred_shape, pred_theta, pred_phi, pred_uvd, cam_trans, cam_scale]
    targ_parts = [target_beta, target_theta, target_twist, target_uvd,
                  camera_trans, camera_scale]
    slab_dtype = jnp.result_type(*[p.dtype for p in pred_parts + targ_parts])
    pred_slab = jnp.concatenate([p.astype(slab_dtype) for p in pred_parts], axis=1)
    targ_slab = jnp.concatenate([t.astype(slab_dtype) for t in targ_parts], axis=1)

    # Raw 0/1 visibility weights only (exact in bf16); all scaling is deferred
    # to the wrapper, applied on per-column sums.
    wgt_slab = jnp.concatenate(
        [jnp.broadcast_to(sw, (B, n_beta)),        # beta:  sw
         sw * theta_wt,                            # theta: sw * theta_wt
         twist_wt,                                 # twist: twist_wt
         uvd_wt,                                   # uvd:   uvd_wt (L1 path)
         jnp.broadcast_to(sw2, (B, n_trans)),      # cam trans: sw2
         jnp.broadcast_to(sw2, (B, n_scale))],     # cam scale: sw2
        axis=1).astype(jnp.bfloat16)

    F = pred_slab.shape[1]
    F_pad = _round_up(F, 128)
    TB = min(1024, _round_up(B, 8))                # big tiles: fewer grid steps
    B_pad = _round_up(B, TB)
    num_blocks = B_pad // TB

    def pad2(x):
        return jnp.pad(x, ((0, B_pad - B), (0, F_pad - F)))

    pred_slab = pad2(pred_slab)
    targ_slab = pad2(targ_slab)
    wgt_slab = pad2(wgt_slab)          # zero weights in padded rows/cols -> no effect

    # ---- Per-column constants applied on the column sums in the wrapper -----
    col_scale = np.zeros((F_pad,), np.float32)     # term_weight / (B * n) per col
    uvd_mask = np.zeros((F_pad,), np.float32)      # 1.0 on the UVD columns
    off = 0
    col_scale[off:off + n_beta] = float(elements['BETA_WEIGHT']) / (B * n_beta)
    off += n_beta
    col_scale[off:off + n_theta] = float(elements['THETA_WEIGHT']) / (B * n_theta)
    off += n_theta
    col_scale[off:off + n_twist] = float(elements['TWIST_WEIGHT']) / (B * n_twist)
    off += n_twist
    uvd_mask[off:off + n_uvd] = 1.0
    off += n_uvd
    col_scale[off:off + n_trans] = 1.0 / (B * n_trans)
    off += n_trans
    col_scale[off:off + n_scale] = 1.0 / (B * n_scale)
    off += n_scale

    bytes_accessed = int(
        pred_slab.size * jnp.dtype(pred_slab.dtype).itemsize
        + targ_slab.size * jnp.dtype(targ_slab.dtype).itemsize
        + wgt_slab.size * jnp.dtype(wgt_slab.dtype).itemsize
        + num_blocks * 3 * F_pad * 4)

    parts = pl.pallas_call(
        _loss_partials_kernel,
        out_shape=jax.ShapeDtypeStruct((num_blocks, 3, F_pad), jnp.float32),
        grid=(num_blocks,),
        in_specs=[
            pl.BlockSpec((TB, F_pad), lambda i: (i, 0)),
            pl.BlockSpec((TB, F_pad), lambda i: (i, 0)),
            pl.BlockSpec((TB, F_pad), lambda i: (i, 0)),
        ],
        out_specs=pl.BlockSpec((1, 3, F_pad), lambda i: (i, 0, 0)),
        compiler_params=pltpu.CompilerParams(
            dimension_semantics=("parallel",)),      # v7x: split blocks over 2 TCs
        cost_estimate=pl.CostEstimate(
            flops=int(7 * B_pad * F_pad), transcendentals=0,
            bytes_accessed=bytes_accessed),
    )(pred_slab, targ_slab, wgt_slab)

    # ---- Tiny finalize on (F_pad,) vectors (XLA) -----------------------------
    cols = jnp.sum(parts, axis=0)                 # (3, F_pad)
    col_scale_j = jnp.asarray(col_scale)
    uvd_mask_j = jnp.asarray(uvd_mask)
    l2 = jnp.sum(cols[0] * col_scale_j)           # all MSE terms, pre-weighted
    l1_sum = jnp.sum(cols[1] * uvd_mask_j)        # UVD L1 numerator (without *64)
    w_sum = jnp.sum(cols[2] * uvd_mask_j)         # UVD weight sum

    uvd_scale = 64.0 * float(elements['UVD24_WEIGHT'])   # fold *64 and term weight
    if size_average:
        loss_uvd = jnp.where(w_sum > 0.0, l1_sum / jnp.maximum(w_sum, 1e-30), l1_sum)
    else:
        loss_uvd = l1_sum
    return l2 + uvd_scale * loss_uvd


def _reference_loss(output, labels, elements, size_average=True):
    """Pure-JAX reference mirroring the PyTorch forward, for validation."""
    def mse(a, b):
        return jnp.mean((a - b) ** 2)

    def wl1(inp, tgt, w):
        out = jnp.abs(inp * 64.0 - tgt * 64.0) * w
        s, ws = jnp.sum(out), jnp.sum(w)
        if size_average:
            return jnp.where(ws > 0, s / ws, s)
        return s

    sw = labels['target_smpl_weight']
    loss_beta = mse(output['pred_shape'] * sw, labels['target_beta'] * sw)
    loss_theta = mse(output['pred_theta_mats'] * sw * labels['target_theta_weight'],
                     labels['target_theta'] * sw * labels['target_theta_weight'])
    loss_twist = mse(output['pred_phi'] * labels['target_twist_weight'],
                     labels['target_twist'] * labels['target_twist_weight'])
    B = output['pred_shape'].shape[0]
    pred_uvd = output['pred_uvd_jts'].reshape(B, -1, 3)[:, :29].reshape(B, -1)
    loss_uvd = wl1(pred_uvd, labels['target_uvd_29'][:, :87],
                   labels['target_weight_29'][:, :87])
    loss = (loss_beta * elements['BETA_WEIGHT'] + loss_theta * elements['THETA_WEIGHT']
            + loss_twist * elements['TWIST_WEIGHT'] + loss_uvd * elements['UVD24_WEIGHT'])
    xyz_w = labels['target_xyz_weight_24'][:, :72]
    sw2 = (jnp.sum(xyz_w, axis=1, keepdims=True) > 3).astype(jnp.float32)
    loss += mse(output['cam_trans'] * sw2, labels['camera_trans'] * sw2)
    loss += mse(output['cam_scale'] * sw2, labels['camera_scale'] * sw2)
    return loss


if __name__ == "__main__":
    ELEMENTS = {
        'BETA_WEIGHT': 1.0, 'BETA_REG_WEIGHT': 0.0, 'PHI_REG_WEIGHT': 0.0001,
        'LEAF_REG_WEIGHT': 0.0, 'THETA_WEIGHT': 0.01, 'UVD24_WEIGHT': 1.0,
        'XYZ24_WEIGHT': 0.0, 'XYZ_SMPL24_WEIGHT': 0.0, 'XYZ_SMPL17_WEIGHT': 0.0,
        'VERTICE_WEIGHT': 0.0, 'TWIST_WEIGHT': 0.01,
    }

    B = 2
    key = jax.random.PRNGKey(0)
    ks = jax.random.split(key, 20)
    f32 = jnp.float32

    output = {
        'pred_shape':      jax.random.normal(ks[0], (B, 10), f32),
        'pred_theta_mats': jax.random.normal(ks[1], (B, 96), f32),
        'pred_phi':        jax.random.normal(ks[2], (B, 23, 2), f32),
        'pred_xyz_jts_29': jax.random.normal(ks[3], (B, 87), f32) * 0.1,
        'pred_uvd_jts':    jax.random.normal(ks[4], (B, 87), f32) * 0.1,
        'cam_trans':       jax.random.normal(ks[5], (B, 3), f32),
        'cam_scale':       jax.random.normal(ks[6], (B, 1), f32),
    }
    labels = {
        'target_smpl_weight':   jax.random.bernoulli(ks[7], 0.8, (B, 1)).astype(f32),
        'target_beta':          jax.random.normal(ks[8], (B, 10), f32),
        'target_theta':         jax.random.normal(ks[9], (B, 96), f32),
        'target_theta_weight':  jax.random.bernoulli(ks[10], 0.8, (B, 96)).astype(f32),
        'target_twist':         jax.random.normal(ks[11], (B, 23, 2), f32),
        'target_twist_weight':  jax.random.bernoulli(ks[12], 0.8, (B, 23, 2)).astype(f32),
        'target_xyz_24':        jax.random.normal(ks[13], (B, 72), f32) * 0.1,
        'target_xyz_weight_24': jax.random.bernoulli(ks[14], 0.5, (B, 72)).astype(f32),
        'target_uvd_29':        jax.random.normal(ks[15], (B, 87), f32) * 0.1,
        'target_weight_29':     jax.random.bernoulli(ks[16], 0.8, (B, 87)).astype(f32),
        'camera_trans':         jax.random.normal(ks[17], (B, 3), f32),
        'camera_scale':         jax.random.normal(ks[18], (B, 1), f32),
    }

    loss = l1_loss_dim_smpl_cam(output, labels, ELEMENTS, size_average=True)
    loss = jax.block_until_ready(loss)

    ref = _reference_loss(output, labels, ELEMENTS, size_average=True)
    assert jnp.allclose(loss, ref, rtol=1e-5, atol=1e-5), (loss, ref)

    print("KERNEL_OK")
</pallas_src>

<mosaic_0001>
module attributes {stable_mosaic.version = 11 : i64} {
  func.func @_loss_partials_kernel(%arg0: i32, %arg1: memref<8x256xf32, #tpu.memory_space<vmem>>, %arg2: memref<8x256xf32, #tpu.memory_space<vmem>>, %arg3: memref<8x256xbf16, #tpu.memory_space<vmem>>, %arg4: memref<1x3x256xf32, #tpu.memory_space<vmem>>) attributes {dimension_semantics = [#tpu.dimension_semantics<parallel>], iteration_bounds = array<i64: 1>, scalar_prefetch = 0 : i64, scratch_operands = 0 : i64, tpu.core_type = #tpu.core_type<tc>, window_params = [{transform_indices = @transform_0, window_bounds = array<i64: 8, 256>}, {transform_indices = @transform_1, window_bounds = array<i64: 8, 256>}, {transform_indices = @transform_2, window_bounds = array<i64: 8, 256>}, {transform_indices = @transform_3, window_bounds = array<i64: 1, 3, 256>}]} {
    %c0 = arith.constant 0 : index
    %c0_0 = arith.constant 0 : index
    %0 = vector.load %arg1[%c0, %c0_0] : memref<8x256xf32, #tpu.memory_space<vmem>>, vector<8x256xf32>
    %c0_1 = arith.constant 0 : index
    %c0_2 = arith.constant 0 : index
    %1 = vector.load %arg2[%c0_1, %c0_2] : memref<8x256xf32, #tpu.memory_space<vmem>>, vector<8x256xf32>
    %c0_3 = arith.constant 0 : index
    %c0_4 = arith.constant 0 : index
    %2 = vector.load %arg3[%c0_3, %c0_4] : memref<8x256xbf16, #tpu.memory_space<vmem>>, vector<8x256xbf16>
    %3 = arith.extf %2 : vector<8x256xbf16> to vector<8x256xf32>
    %4 = arith.subf %0, %1 : vector<8x256xf32>
    %5 = arith.mulf %4, %3 : vector<8x256xf32>
    %6 = arith.mulf %5, %5 : vector<8x256xf32>
    %cst = arith.constant dense<0.000000e+00> : vector<256xf32>
    %7 = vector.multi_reduction <add>, %6, %cst [0] : vector<8x256xf32> to vector<256xf32>
    %8 = vector.shape_cast %7 : vector<256xf32> to vector<1x256xf32>
    %9 = math.absf %5 : vector<8x256xf32>
    %cst_5 = arith.constant dense<0.000000e+00> : vector<256xf32>
    %10 = vector.multi_reduction <add>, %9, %cst_5 [0] : vector<8x256xf32> to vector<256xf32>
    %11 = vector.shape_cast %10 : vector<256xf32> to vector<1x256xf32>
    %cst_6 = arith.constant dense<0.000000e+00> : vector<256xf32>
    %12 = vector.multi_reduction <add>, %3, %cst_6 [0] : vector<8x256xf32> to vector<256xf32>
    %13 = vector.shape_cast %12 : vector<256xf32> to vector<1x256xf32>
    %14 = tpu.concatenate %8, %11, %13 in 0 : vector<1x256xf32>, vector<1x256xf32>, vector<1x256xf32> -> vector<3x256xf32>
    %15 = vector.shape_cast %14 : vector<3x256xf32> to vector<1x3x256xf32>
    %c0_7 = arith.constant 0 : index
    %c0_8 = arith.constant 0 : index
    %c0_9 = arith.constant 0 : index
    %16 = vector.load %arg4[%c0_7, %c0_8, %c0_9] : memref<1x3x256xf32, #tpu.memory_space<vmem>>, vector<1x3x256xf32>
    tpu.vector_store %arg4[%c0_7, %c0_8, %c0_9], %15 {strides = array<i32>} : memref<1x3x256xf32, #tpu.memory_space<vmem>>, vector<1x3x256xf32>,
    return
  }
  func.func @transform_0(%arg0: i32) -> (i32, i32) {
    %c0_i32 = arith.constant 0 : i32
    %c0_i32_0 = arith.constant 0 : i32
    return %arg0, %c0_i32 : i32, i32
  }
  func.func @transform_1(%arg0: i32) -> (i32, i32) {
    %c0_i32 = arith.constant 0 : i32
    %c0_i32_0 = arith.constant 0 : i32
    return %arg0, %c0_i32 : i32, i32
  }
  func.func @transform_2(%arg0: i32) -> (i32, i32) {
    %c0_i32 = arith.constant 0 : i32
    %c0_i32_0 = arith.constant 0 : i32
    return %arg0, %c0_i32 : i32, i32
  }
  func.func @transform_3(%arg0: i32) -> (i32, i32, i32) {
    %c0_i32 = arith.constant 0 : i32
    %c0_i32_0 = arith.constant 0 : i32
    %c0_i32_1 = arith.constant 0 : i32
    return %arg0, %c0_i32, %c0_i32_0 : i32, i32, i32
  }
}

</mosaic_0001>

<llo_original>
// kernel: tpu_custom_call.1
$region0: #{tpu_custom_call.1}
  #allocation0 [shape = 'u32[]', space=smem, size = 0x4, offset = 0x4, fixed_abs, tag = 'smem constant byte address 0x4 - core index']
  #allocation1 [shape = 'u32[144,128]{1,0:T(1,128)}', space=vmem, size = 0x12000, scoped, tag = 'internal scratch']
  %s0 = inlined_call_operand.hbm [shape: f32[8,256], index: 0, kind: input, shape index: {}]
  %s1 = inlined_call_operand.hbm [shape: f32[8,256], index: 1, kind: input, shape index: {}]
  %s2 = inlined_call_operand.hbm [shape: bf16[8,256], index: 2, kind: input, shape index: {}]
  %s3 = inlined_call_operand.vmem [shape: f32[1,3,256], index: 3, kind: output, shape index: {}]
  %s4 = sld [smem:[#allocation0]]
  $region34: #{tpu_custom_call.1} parent=0
    _
  %s6 = ssub.s32 1, %s4
  %s7 = scalar_select 0, %s6, %s4
  $region1: #{tpu_custom_call.1} parent=0
    #allocation2 [shape = 'u8[8192]{0}', space=vmem, size = 0x2000, scoped, tag = 'input window, operand 0, single buffered']
    #allocation3 [shape = 's32[1]{0}', space=sflag, size = 0x4, scoped, tag = 'scoped memory for tpu_custom_call.1']
    #allocation4 [shape = 'u8[8192]{0}', space=vmem, size = 0x2000, scoped, tag = 'input window, operand 1, single buffered']
    #allocation5 [shape = 's32[1]{0}', space=sflag, size = 0x4, scoped, tag = 'scoped memory for tpu_custom_call.1']
    #allocation6 [shape = 'u8[4096]{0}', space=vmem, size = 0x1000, scoped, tag = 'input window, operand 2, single buffered']
    %8 = vsyncpa [#allocation3], 0
    %9 = vsyncpa [#allocation5], 0
    // Predicated region
    $region2: #{tpu_custom_call.1} parent=1 // pred_check
      _
    $region3: #{tpu_custom_call.1} parent=1 // pred_check_branch
      %11 = sbr.rel (0) target = $region5
    $region4: #{tpu_custom_call.1} parent=1 // pred_region
      %s13 = ssub.s32 256, 256
      %14 = vsyncadd [#allocation3], %s13
      %s16 = sshll.u32 [#allocation2], 4
      %s17 = int_to_ptr.vmem [resolvable:$true] %s16
      %19 = dma.hbm_to_vmem [thread:$0]  %s0, 256, %s17, [#allocation3]
    $region5: #{tpu_custom_call.1} parent=1 // pred_fallthru
      _
    // Predicated region
    $region6: #{tpu_custom_call.1} parent=1 // pred_check
      _
    $region7: #{tpu_custom_call.1} parent=1 // pred_check_branch
      %21 = sbr.rel (0) target = $region9
    $region8: #{tpu_custom_call.1} parent=1 // pred_region
      %s23 = ssub.s32 256, 256
      %24 = vsyncadd [#allocation5], %s23
      %s26 = sshll.u32 [#allocation4], 4
      %s27 = int_to_ptr.vmem [resolvable:$true] %s26
      %29 = dma.hbm_to_vmem [thread:$0]  %s1, 256, %s27, [#allocation5]
    $region9: #{tpu_custom_call.1} parent=1 // pred_fallthru
      _
    // Predicated region
    $region10: #{tpu_custom_call.1} parent=1 // pred_check
      _
    $region11: #{tpu_custom_call.1} parent=1 // pred_check_branch
      %31 = sbr.rel (0) target = $region13
    $region12: #{tpu_custom_call.1} parent=1 // pred_region
      %s33 = ssub.s32 128, 128
      %34 = vsyncadd [#allocation5], %s33
      %s36 = sshll.u32 [#allocation6], 4
      %s37 = int_to_ptr.vmem [resolvable:$true] %s36
      %39 = dma.hbm_to_vmem [thread:$0]  %s2, 128, %s37, [#allocation5]
    $region13: #{tpu_custom_call.1} parent=1 // pred_fallthru
      _
    // Predicated region
    $region14: #{tpu_custom_call.1} parent=1 // pred_check
      _
    $region15: #{tpu_custom_call.1} parent=1 // pred_check_branch
      %41 = sbr.rel (0) target = $region17
    $region16: #{tpu_custom_call.1} parent=1 // pred_region
      %42 = dma.done [#allocation3], 256
    $region17: #{tpu_custom_call.1} parent=1 // pred_fallthru
      _
    // Predicated region
    $region18: #{tpu_custom_call.1} parent=1 // pred_check
      _
    $region19: #{tpu_custom_call.1} parent=1 // pred_check_branch
      %44 = sbr.rel (0) target = $region21
    $region20: #{tpu_custom_call.1} parent=1 // pred_region
      %45 = dma.done [#allocation5], 256
    $region21: #{tpu_custom_call.1} parent=1 // pred_fallthru
      _
    // Predicated region
    $region22: #{tpu_custom_call.1} parent=1 // pred_check
      _
    $region23: #{tpu_custom_call.1} parent=1 // pred_check_branch
      %47 = sbr.rel (0) target = $region25
    $region24: #{tpu_custom_call.1} parent=1 // pred_region
      %48 = dma.done [#allocation5], 128
    $region25: #{tpu_custom_call.1} parent=1 // pred_fallthru
      _
    %v49 = vld [vmem:[#allocation2] sm:$0xff]
    %v50 = vld [vmem:[#allocation2 + $0x8] sm:$0xff]
    %v51 = vld [vmem:[#allocation4] sm:$0xff]
    %v52 = vld [vmem:[#allocation4 + $0x8] sm:$0xff]
    %v53 = vld [vmem:[#allocation6] sm:$0xff]
    %v54 = vunpack.c.l.bf16 %v53
    %v55 = vunpack.c.h.bf16 %v53
    %v56 = vsub.f32 %v49, %v51
    %v57 = vsub.f32 %v50, %v52
    %v58 = vmul.f32 %v56, %v54
    %v59 = vmul.f32 %v57, %v55
    %v60 = vmul.f32 %v58, %v58
    %v61 = vmul.f32 %v59, %v59
    %v62 = vrot.slane %v60, 4
    %v63 = vadd.f32 %v60, %v62
    %v64 = vrot.slane %v63, 2
    %v65 = vadd.f32 %v63, %v64
    %v66 = vrot.slane %v65, 1
    %v67 = vadd.f32 %v65, %v66
    %v68 = vrot.slane %v61, 4
    %v69 = vadd.f32 %v61, %v68
    %v70 = vrot.slane %v69, 2
    %v71 = vadd.f32 %v69, %v70
    %v72 = vrot.slane %v71, 1
    %v73 = vadd.f32 %v71, %v72
    %v74 = vand.u32 2147483647, %v58
    %v75 = vand.u32 2147483647, %v59
    %v76 = vrot.slane %v74, 4
    %v77 = vadd.f32 %v74, %v76
    %v78 = vrot.slane %v77, 2
    %v79 = vadd.f32 %v77, %v78
    %v80 = vrot.slane %v79, 1
    %v81 = vadd.f32 %v79, %v80
    %v82 = vrot.slane %v75, 4
    %v83 = vadd.f32 %v75, %v82
    %v84 = vrot.slane %v83, 2
    %v85 = vadd.f32 %v83, %v84
    %v86 = vrot.slane %v85, 1
    %v87 = vadd.f32 %v85, %v86
    %v88 = vrot.slane %v54, 4
    %v89 = vadd.f32 %v54, %v88
    %v90 = vrot.slane %v89, 2
    %v91 = vadd.f32 %v89, %v90
    %v92 = vrot.slane %v91, 1
    %v93 = vadd.f32 %v91, %v92
    %v94 = vrot.slane %v55, 4
    %v95 = vadd.f32 %v55, %v94
    %v96 = vrot.slane %v95, 2
    %v97 = vadd.f32 %v95, %v96
    %v98 = vrot.slane %v97, 1
    %v99 = vadd.f32 %v97, %v98
    %vm100 = vcmask 1040384
    %v101 = vsel %vm100, %v67, %v81
    %v102 = vsel %vm100, %v73, %v87
    %vm103 = vcmask 1041408
    %v104 = vsel %vm103, %v101, %v93
    %v105 = vsel %vm103, %v102, %v99
    %v108 = vcombine.low %v104, %v105
    %110 = vst [vmem:[%s3] sm:$0x77] %v108
    // Predicated region
    $region26: #{tpu_custom_call.1} parent=1 // pred_check
      _
    $region27: #{tpu_custom_call.1} parent=1 // pred_check_branch
      %112 = sbr.rel (0) target = $region29
    $region28: #{tpu_custom_call.1} parent=1 // pred_region
      _
    $region29: #{tpu_custom_call.1} parent=1 // pred_fallthru
      _
    // Predicated region
    $region30: #{tpu_custom_call.1} parent=1 // pred_check
      _
    $region31: #{tpu_custom_call.1} parent=1 // pred_check_branch
      %114 = sbr.rel (0) target = $region33
    $region32: #{tpu_custom_call.1} parent=1 // pred_region
      _
    $region33: #{tpu_custom_call.1} parent=1 // pred_fallthru
      _
    %115 = vsyncpa [#allocation3], 1
    %116 = vsyncpa [#allocation5], 1

</llo_original>
